<compile_context>
chip_gen: v7x
topology: tpu7x:2x2x1
jax: 0.10.0
libtpu: 0.0.40
codegen_flags: <defaults>
</compile_context>

<pallas_src>
import jax
import jax.numpy as jnp
from jax.experimental import pallas as pl
from jax.experimental.pallas import tpu as pltpu

# ----- small stand-in sizes (real model: C_IN=2048, HID=512, K=50) -----
B = 2
C_IN = 128                      # backbone output channels (stand-in for 2048)
HID = 64                        # hidden_dim (stand-in for 512)
K = 8                           # number of MC samples (stand-in for K=50)
HF = WF = 9                     # backbone feature spatial size
ZOOM = 8
H_OUT = (HF - 1) * ZOOM + 1     # original image height (zoom_factor=8)
W_OUT = (WF - 1) * ZOOM + 1
NP = HF * WF                    # pixels per image
TMP = 128 if NP <= 1024 else 512  # pixel-tile (lane) width; grow at real sizes
P_PAD = ((NP + TMP - 1) // TMP) * TMP
K_PAD = ((K + 1 + 7) // 8) * 8  # eps rows: K MC samples + 1 prob_x sample, sublane pad
PACK_ROWS = 8                   # packed small-weight rows (mean/std/conv∘pred + pad)
OUT_ROWS = 8                    # packed output rows (pre_pred/probx/mean3/var + pad)
W_PAD = ((W_OUT + 127) // 128) * 128   # lane-dense padded upsampler width
NIMG = 4 * B                    # x, prob_x, mean3, var -> 4 single-channel maps/batch
BN_EPS = 1e-5

assert P_PAD % TMP == 0
assert K + 1 <= K_PAD
assert PACK_ROWS >= 3 and OUT_ROWS >= 4
assert W_OUT <= W_PAD
assert HID % 8 == 0


# ---------------------------------------------------------------------------
# Fused head kernel (channels-first; lane axis = pixels).
#   feat block : (1, C_IN, TMP)   bf16
#   wproj      : (HID, C_IN)      bf16   (eval-BN scale pre-folded into rows)
#   shift      : (HID, 1)         f32    (eval-BN additive term)
#   wpack      : (PACK_ROWS, HID) f32    rows = [wmean ; wstd ; wpred@wconv ; 0]
#   eps block  : (1, K_PAD, TMP)  f32    rows 0..K-1 = MC eps, row K = prob_x eps
#   out block  : (1, OUT_ROWS, TMP) f32  rows = [pre_pred ; probx ; mean3 ; var ; 0]
# ---------------------------------------------------------------------------
def fused_head_kernel(feat_ref, wproj_ref, shift_ref, wpack_ref, eps_ref, out_ref):
    # input_proj: 1x1 conv (BN scale folded) + shift + ReLU   (bf16 MXU, f32 acc)
    h = jnp.dot(wproj_ref[...], feat_ref[0],
                preferred_element_type=jnp.float32)            # (HID, TMP)
    h = jnp.maximum(h + shift_ref[...], 0.0)

    # one packed matmul for the three narrow 1x1 convs
    small = jnp.dot(wpack_ref[...], h,
                    preferred_element_type=jnp.float32)        # (PACK_ROWS, TMP)
    mu = small[0:1, :]
    logvar = small[1:2, :]
    pre_pred = small[2:3, :]                                   # (wpred@wconv) @ h

    std = jnp.exp(0.5 * logvar)
    eps = eps_ref[0]                                           # (K_PAD, TMP)
    z = mu + eps[0:K, :] * std                                 # K MC samples
    probx = mu + eps[K:K + 1, :] * std                         # k=1 reparameterization

    samples = 1.0 / (1.0 + jnp.exp(-z))                        # sigmoid, (K, TMP)
    m = jnp.sum(samples, axis=0, keepdims=True) * (1.0 / K)
    d = samples - m
    var = jnp.sum(d * d, axis=0, keepdims=True) * (1.0 / (K - 1))  # unbiased, centered

    out_ref[0] = jnp.concatenate(
        [pre_pred, probx, m, var,
         jnp.zeros((OUT_ROWS - 4, TMP), jnp.float32)], axis=0)  # full-block store


def fused_head(feat_cp, wproj_s, shift_col, wpack, eps):
    grid = (B, P_PAD // TMP)
    return pl.pallas_call(
        fused_head_kernel,
        out_shape=jax.ShapeDtypeStruct((B, OUT_ROWS, P_PAD), jnp.float32),
        grid=grid,
        in_specs=[
            pl.BlockSpec((1, C_IN, TMP), lambda b, j: (b, 0, j)),
            pl.BlockSpec((HID, C_IN), lambda b, j: (0, 0)),
            pl.BlockSpec((HID, 1), lambda b, j: (0, 0)),
            pl.BlockSpec((PACK_ROWS, HID), lambda b, j: (0, 0)),
            pl.BlockSpec((1, K_PAD, TMP), lambda b, j: (b, 0, j)),
        ],
        out_specs=pl.BlockSpec((1, OUT_ROWS, TMP), lambda b, j: (b, 0, j)),
        compiler_params=pltpu.CompilerParams(
            dimension_semantics=("parallel", "parallel")),
    )(feat_cp, wproj_s, shift_col, wpack, eps)


# ---------------------------------------------------------------------------
# Bilinear upsample (align_corners=True), one single-channel map per grid step:
#   out[i] = RH (H_OUT,HF) @ a[i] (HF,WF) @ RW^T (WF,W_PAD)
# Shared interp matrices; wrapper slices the lane pad back to W_OUT.
# ---------------------------------------------------------------------------
def bilinear_kernel(a_ref, rwt_ref, rh_ref, out_ref):
    t = jnp.dot(a_ref[0], rwt_ref[...],
                preferred_element_type=jnp.float32)            # (HF, W_PAD)
    out_ref[0] = jnp.dot(rh_ref[...], t,
                         preferred_element_type=jnp.float32)   # (H_OUT, W_PAD)


def bilinear_up(maps, rwt_pad, rh):
    return pl.pallas_call(
        bilinear_kernel,
        out_shape=jax.ShapeDtypeStruct((NIMG, H_OUT, W_PAD), jnp.float32),
        grid=(NIMG,),
        in_specs=[
            pl.BlockSpec((1, HF, WF), lambda i: (i, 0, 0)),
            pl.BlockSpec((WF, W_PAD), lambda i: (0, 0)),
            pl.BlockSpec((H_OUT, HF), lambda i: (0, 0)),
        ],
        out_specs=pl.BlockSpec((1, H_OUT, W_PAD), lambda i: (i, 0, 0)),
        compiler_params=pltpu.CompilerParams(
            dimension_semantics=("parallel",)),
    )(maps, rwt_pad, rh)


# ---------------------------------------------------------------------------
# glue
# ---------------------------------------------------------------------------
def interp_matrix(n_out, n_in):
    """Row-interpolation matrix for bilinear resize with align_corners=True."""
    src = jnp.arange(n_out, dtype=jnp.float32) * (n_in - 1) / (n_out - 1)
    i0 = jnp.clip(jnp.floor(src).astype(jnp.int32), 0, n_in - 1)
    i1 = jnp.clip(i0 + 1, 0, n_in - 1)
    frac = src - i0.astype(jnp.float32)
    oh0 = jax.nn.one_hot(i0, n_in, dtype=jnp.float32)
    oh1 = jax.nn.one_hot(i1, n_in, dtype=jnp.float32)
    return (1.0 - frac)[:, None] * oh0 + frac[:, None] * oh1


def init_params(key):
    ks = jax.random.split(key, 10)
    p = {}
    wproj = jax.random.normal(ks[0], (HID, C_IN), jnp.float32) / jnp.sqrt(C_IN)
    gamma = 1.0 + 0.1 * jax.random.normal(ks[1], (HID,), jnp.float32)
    beta = 0.1 * jax.random.normal(ks[2], (HID,), jnp.float32)
    rmean = 0.1 * jax.random.normal(ks[3], (HID,), jnp.float32)
    rvar = jnp.abs(1.0 + 0.1 * jax.random.normal(ks[4], (HID,), jnp.float32))
    scale = gamma / jnp.sqrt(rvar + BN_EPS)            # folded eval-mode BatchNorm
    p["wproj_s"] = (wproj * scale[:, None]).astype(jnp.bfloat16)   # (HID, C_IN)
    p["shift"] = (beta - rmean * scale).reshape(HID, 1)            # (HID, 1)
    wconv = jax.random.normal(ks[5], (HID, HID), jnp.float32) / jnp.sqrt(HID)
    wmean = jax.random.normal(ks[6], (1, HID), jnp.float32) / jnp.sqrt(HID)
    wstd = jax.random.normal(ks[7], (1, HID), jnp.float32) / jnp.sqrt(HID)
    wpred = jax.random.normal(ks[8], (1, HID), jnp.float32) / jnp.sqrt(HID)
    # pred((1-u)*conv(h)) = (1-u)*((wpred@wconv)@h) + b  (u is a per-pixel scalar)
    w_convpred = wpred @ wconv                                      # (1, HID), f32
    p["wpack"] = jnp.concatenate(
        [wmean, wstd, w_convpred,
         jnp.zeros((PACK_ROWS - 3, HID), jnp.float32)], axis=0)     # (PACK_ROWS, HID)
    p["bpred"] = 0.1 * jax.random.normal(ks[9], (), jnp.float32)
    return p


def ugtr_head_forward(feat, params, eps_key):
    """Eval-mode forward of the UGTR head. feat: (B, C_IN, HF, WF) NCHW."""
    # Channels-first flatten: reshape is free, then only a pixel-axis pad + bf16
    # cast (single fused pass) — no full NCHW->NHWC transpose of the feature map.
    feat_cp = feat.reshape(B, C_IN, NP)
    feat_cp = jnp.pad(feat_cp, ((0, 0), (0, 0), (0, P_PAD - NP))).astype(jnp.bfloat16)

    # host-side Gaussian noise (rows 0..K-1: MC samples, row K: prob_x sample)
    eps = jax.random.normal(eps_key, (B, K_PAD, P_PAD), jnp.float32)

    slab = fused_head(feat_cp, params["wproj_s"], params["shift"],
                      params["wpack"], eps)                   # (B, OUT_ROWS, P_PAD)

    pre_pred = slab[:, 0, :NP]
    probx = slab[:, 1, :NP]
    mean3 = slab[:, 2, :NP]
    var = slab[:, 3, :NP]     # uncertainty == std3 (PyTorch normalizes .var for both)

    umin = jnp.min(var)
    umax = jnp.max(var)
    unc = (var - umin) / (umax - umin + 1e-12)     # eps guards zero range
    # residual *= (1 - uncertainty); x = pred(residual)  (conv folded into pred)
    x = (1.0 - unc) * pre_pred + params["bpred"]

    maps = jnp.concatenate([x, probx, mean3, var], axis=0).reshape(NIMG, HF, WF)

    rh = interp_matrix(H_OUT, HF)                                   # (H_OUT, HF)
    rwt_pad = jnp.pad(interp_matrix(W_OUT, WF).T,
                      ((0, 0), (0, W_PAD - W_OUT)))                 # (WF, W_PAD)

    up = bilinear_up(maps, rwt_pad, rh)[:, :, :W_OUT]               # (NIMG, H_OUT, W_OUT)
    x_up, probx_up, mean3_up, std3_up = jnp.split(up, 4, axis=0)    # each (B, H_OUT, W_OUT)
    x_up = x_up[:, None]                                            # (B, 1, H_OUT, W_OUT)
    probx_up = probx_up[:, None]
    mean3_up = mean3_up[:, None]
    std3_up = std3_up[:, None]

    sig_x = jax.nn.sigmoid(x_up)                    # sigmoid after upsample (as in ref)
    std3_norm = (std3_up - jnp.min(std3_up)) / (jnp.max(std3_up)
                                                - jnp.min(std3_up) + 1e-12)
    # TODO(synk): vis_att comes from the (untranslated) transformer; prob_x is
    # returned in its place.
    return sig_x, std3_norm, mean3_up, probx_up


if __name__ == "__main__":
    root = jax.random.PRNGKey(0)
    k_feat, k_param, k_eps = jax.random.split(root, 3)

    feat = jax.random.normal(k_feat, (B, C_IN, HF, WF), jnp.float32)
    params = init_params(k_param)

    sig_x, std3_norm, mean3_up, probx_up = ugtr_head_forward(feat, params, k_eps)
    jax.block_until_ready((sig_x, std3_norm, mean3_up, probx_up))

    assert sig_x.shape == (B, 1, H_OUT, W_OUT)
    assert std3_norm.shape == (B, 1, H_OUT, W_OUT)
    assert mean3_up.shape == (B, 1, H_OUT, W_OUT)
    assert probx_up.shape == (B, 1, H_OUT, W_OUT)
    assert bool(jnp.all(jnp.isfinite(sig_x)))
    assert bool(jnp.all(jnp.isfinite(std3_norm)))
    assert bool(jnp.all(jnp.isfinite(mean3_up)))
    assert bool(jnp.all(jnp.isfinite(probx_up)))
    print("KERNEL_OK")
</pallas_src>

<mosaic_0001>
module attributes {stable_mosaic.version = 11 : i64} {
  func.func @fused_head_kernel(%arg0: i32, %arg1: i32, %arg2: memref<1x128x128xbf16, #tpu.memory_space<vmem>>, %arg3: memref<64x128xbf16, #tpu.memory_space<vmem>>, %arg4: memref<64x1xf32, #tpu.memory_space<vmem>>, %arg5: memref<8x64xf32, #tpu.memory_space<vmem>>, %arg6: memref<1x16x128xf32, #tpu.memory_space<vmem>>, %arg7: memref<1x8x128xf32, #tpu.memory_space<vmem>>) attributes {dimension_semantics = [#tpu.dimension_semantics<parallel>, #tpu.dimension_semantics<parallel>], iteration_bounds = array<i64: 2, 1>, scalar_prefetch = 0 : i64, scratch_operands = 0 : i64, tpu.core_type = #tpu.core_type<tc>, window_params = [{transform_indices = @transform_0, window_bounds = array<i64: 1, 128, 128>}, {pipeline_mode = #tpu.pipeline_mode<synchronous>, transform_indices = @transform_1, window_bounds = array<i64: 64, 128>}, {pipeline_mode = #tpu.pipeline_mode<synchronous>, transform_indices = @transform_2, window_bounds = array<i64: 64, 1>}, {pipeline_mode = #tpu.pipeline_mode<synchronous>, transform_indices = @transform_3, window_bounds = array<i64: 8, 64>}, {transform_indices = @transform_4, window_bounds = array<i64: 1, 16, 128>}, {transform_indices = @transform_5, window_bounds = array<i64: 1, 8, 128>}]} {
    %c0 = arith.constant 0 : index
    %c0_0 = arith.constant 0 : index
    %0 = vector.load %arg3[%c0, %c0_0] : memref<64x128xbf16, #tpu.memory_space<vmem>>, vector<64x128xbf16>
    %c0_1 = arith.constant 0 : index
    %c0_2 = arith.constant 0 : index
    %c0_3 = arith.constant 0 : index
    %1 = vector.load %arg2[%c0_1, %c0_2, %c0_3] : memref<1x128x128xbf16, #tpu.memory_space<vmem>>, vector<1x128x128xbf16>
    %2 = vector.shape_cast %1 : vector<1x128x128xbf16> to vector<128x128xbf16>
    %cst = arith.constant dense<0.000000e+00> : vector<64x128xf32>
    %3 = tpu.matmul %0, %2, %cst {dimension_numbers = #tpu.dot_dimension_numbers<[1], [0], [0], [1], [0, 0, 1, 1], [], []>} : vector<64x128xbf16>, vector<128x128xbf16>, vector<64x128xf32> -> vector<64x128xf32>
    %c0_4 = arith.constant 0 : index
    %c0_5 = arith.constant 0 : index
    %4 = vector.load %arg4[%c0_4, %c0_5] : memref<64x1xf32, #tpu.memory_space<vmem>>, vector<64x1xf32>
    %5 = vector.broadcast %4 : vector<64x1xf32> to vector<64x128xf32>
    %6 = arith.addf %3, %5 : vector<64x128xf32>
    %cst_6 = arith.constant 0.000000e+00 : f32
    %7 = vector.broadcast %cst_6 : f32 to vector<64x128xf32>
    %8 = arith.maximumf %6, %7 : vector<64x128xf32>
    %c0_7 = arith.constant 0 : index
    %c0_8 = arith.constant 0 : index
    %9 = vector.load %arg5[%c0_7, %c0_8] : memref<8x64xf32, #tpu.memory_space<vmem>>, vector<8x64xf32>
    %cst_9 = arith.constant dense<0.000000e+00> : vector<8x128xf32>
    %10 = tpu.matmul %9, %8, %cst_9 {dimension_numbers = #tpu.dot_dimension_numbers<[1], [0], [0], [1], [0, 0, 1, 1], [], []>} : vector<8x64xf32>, vector<64x128xf32>, vector<8x128xf32> -> vector<8x128xf32>
    %11 = vector.extract_strided_slice %10 {offsets = [0, 0], sizes = [1, 128], strides = [1, 1]} : vector<8x128xf32> to vector<1x128xf32>
    %12 = vector.extract_strided_slice %10 {offsets = [1, 0], sizes = [1, 128], strides = [1, 1]} : vector<8x128xf32> to vector<1x128xf32>
    %13 = vector.extract_strided_slice %10 {offsets = [2, 0], sizes = [1, 128], strides = [1, 1]} : vector<8x128xf32> to vector<1x128xf32>
    %cst_10 = arith.constant 5.000000e-01 : f32
    %14 = vector.broadcast %cst_10 : f32 to vector<1x128xf32>
    %15 = arith.mulf %14, %12 : vector<1x128xf32>
    %16 = math.exp %15 : vector<1x128xf32>
    %c0_11 = arith.constant 0 : index
    %c0_12 = arith.constant 0 : index
    %c0_13 = arith.constant 0 : index
    %17 = vector.load %arg6[%c0_11, %c0_12, %c0_13] : memref<1x16x128xf32, #tpu.memory_space<vmem>>, vector<1x16x128xf32>
    %18 = vector.shape_cast %17 : vector<1x16x128xf32> to vector<16x128xf32>
    %19 = vector.extract_strided_slice %18 {offsets = [0, 0], sizes = [8, 128], strides = [1, 1]} : vector<16x128xf32> to vector<8x128xf32>
    %20 = vector.broadcast %16 : vector<1x128xf32> to vector<8x128xf32>
    %21 = arith.mulf %19, %20 : vector<8x128xf32>
    %22 = vector.broadcast %11 : vector<1x128xf32> to vector<8x128xf32>
    %23 = arith.addf %22, %21 : vector<8x128xf32>
    %24 = vector.extract_strided_slice %18 {offsets = [8, 0], sizes = [1, 128], strides = [1, 1]} : vector<16x128xf32> to vector<1x128xf32>
    %25 = arith.mulf %24, %16 : vector<1x128xf32>
    %26 = arith.addf %11, %25 : vector<1x128xf32>
    %cst_14 = arith.constant 0.000000e+00 : f32
    %27 = vector.broadcast %cst_14 : f32 to vector<8x128xf32>
    %28 = arith.subf %27, %23 : vector<8x128xf32>
    %29 = math.exp %28 : vector<8x128xf32>
    %cst_15 = arith.constant 1.000000e+00 : f32
    %30 = vector.broadcast %cst_15 : f32 to vector<8x128xf32>
    %31 = arith.addf %30, %29 : vector<8x128xf32>
    %cst_16 = arith.constant 1.000000e+00 : f32
    %32 = vector.broadcast %cst_16 : f32 to vector<8x128xf32>
    %33 = arith.divf %32, %31 : vector<8x128xf32>
    %cst_17 = arith.constant dense<0.000000e+00> : vector<128xf32>
    %34 = vector.multi_reduction <add>, %33, %cst_17 [0] : vector<8x128xf32> to vector<128xf32>
    %35 = vector.shape_cast %34 : vector<128xf32> to vector<1x128xf32>
    %cst_18 = arith.constant 1.250000e-01 : f32
    %36 = vector.broadcast %cst_18 : f32 to vector<1x128xf32>
    %37 = arith.mulf %35, %36 : vector<1x128xf32>
    %38 = vector.broadcast %37 : vector<1x128xf32> to vector<8x128xf32>
    %39 = arith.subf %33, %38 : vector<8x128xf32>
    %40 = arith.mulf %39, %39 : vector<8x128xf32>
    %cst_19 = arith.constant dense<0.000000e+00> : vector<128xf32>
    %41 = vector.multi_reduction <add>, %40, %cst_19 [0] : vector<8x128xf32> to vector<128xf32>
    %42 = vector.shape_cast %41 : vector<128xf32> to vector<1x128xf32>
    %cst_20 = arith.constant 0.142857149 : f32
    %43 = vector.broadcast %cst_20 : f32 to vector<1x128xf32>
    %44 = arith.mulf %42, %43 : vector<1x128xf32>
    %cst_21 = arith.constant 0.000000e+00 : f32
    %45 = vector.broadcast %cst_21 : f32 to vector<4x128xf32>
    %46 = tpu.concatenate %13, %26, %37, %44, %45 in 0 : vector<1x128xf32>, vector<1x128xf32>, vector<1x128xf32>, vector<1x128xf32>, vector<4x128xf32> -> vector<8x128xf32>
    %c0_22 = arith.constant 0 : index
    %c0_23 = arith.constant 0 : index
    %c0_24 = arith.constant 0 : index
    %47 = vector.load %arg7[%c0_22, %c0_23, %c0_24] : memref<1x8x128xf32, #tpu.memory_space<vmem>>, vector<1x8x128xf32>
    %48 = vector.shape_cast %47 : vector<1x8x128xf32> to vector<8x128xf32>
    %49 = vector.shape_cast %46 : vector<8x128xf32> to vector<1x8x128xf32>
    tpu.vector_store %arg7[%c0_22, %c0_23, %c0_24], %49 {strides = array<i32>} : memref<1x8x128xf32, #tpu.memory_space<vmem>>, vector<1x8x128xf32>,
    return
  }
  func.func @transform_0(%arg0: i32, %arg1: i32) -> (i32, i32, i32) {
    %c0_i32 = arith.constant 0 : i32
    %c0_i32_0 = arith.constant 0 : i32
    return %arg0, %c0_i32, %arg1 : i32, i32, i32
  }
  func.func @transform_1(%arg0: i32, %arg1: i32) -> (i32, i32) {
    %c0_i32 = arith.constant 0 : i32
    %c0_i32_0 = arith.constant 0 : i32
    %c0_i32_1 = arith.constant 0 : i32
    return %c0_i32, %c0_i32_0 : i32, i32
  }
  func.func @transform_2(%arg0: i32, %arg1: i32) -> (i32, i32) {
    %c0_i32 = arith.constant 0 : i32
    %c0_i32_0 = arith.constant 0 : i32
    %c0_i32_1 = arith.constant 0 : i32
    return %c0_i32, %c0_i32_0 : i32, i32
  }
  func.func @transform_3(%arg0: i32, %arg1: i32) -> (i32, i32) {
    %c0_i32 = arith.constant 0 : i32
    %c0_i32_0 = arith.constant 0 : i32
    %c0_i32_1 = arith.constant 0 : i32
    return %c0_i32, %c0_i32_0 : i32, i32
  }
  func.func @transform_4(%arg0: i32, %arg1: i32) -> (i32, i32, i32) {
    %c0_i32 = arith.constant 0 : i32
    %c0_i32_0 = arith.constant 0 : i32
    return %arg0, %c0_i32, %arg1 : i32, i32, i32
  }
  func.func @transform_5(%arg0: i32, %arg1: i32) -> (i32, i32, i32) {
    %c0_i32 = arith.constant 0 : i32
    %c0_i32_0 = arith.constant 0 : i32
    return %arg0, %c0_i32, %arg1 : i32, i32, i32
  }
}

</mosaic_0001>

<llo_original>
// kernel: tpu_custom_call.1
$region0: #{tpu_custom_call.1}
  #allocation0 [shape = 'u32[]', space=smem, size = 0x4, offset = 0x4, fixed_abs, tag = 'smem constant byte address 0x4 - core index']
  #allocation1 [shape = 'u32[144,128]{1,0:T(1,128)}', space=vmem, size = 0x12000, scoped, tag = 'internal scratch']
  %s0 = inlined_call_operand.hbm [shape: bf16[2,128,128], index: 0, kind: input, shape index: {}]
  %s1 = inlined_call_operand.vmem [shape: bf16[64,128], index: 1, kind: input, shape index: {}]
  %s2 = inlined_call_operand.vmem [shape: f32[64,1], index: 2, kind: input, shape index: {}]
  %s3 = inlined_call_operand.vmem [shape: f32[8,64], index: 3, kind: input, shape index: {}]
  %s4 = inlined_call_operand.vmem [shape: f32[2,16,128], index: 4, kind: input, shape index: {}]
  %s5 = inlined_call_operand.hbm [shape: f32[2,8,128], index: 5, kind: output, shape index: {}]
  %s6 = sld [smem:[#allocation0]]
  $region57: #{tpu_custom_call.1} parent=0
    _
  %s8 = ssub.s32 1, %s6
  %s9 = scalar_select 0, %s8, %s6
  $region1: #{tpu_custom_call.1} parent=0
    #allocation2 [shape = 'u8[65536]{0}', space=vmem, size = 0x10000, scoped, tag = 'input window, operand 0']
    #allocation3 [shape = 's32[2]{0}', space=sflag, size = 0x8, scoped, tag = 'scoped memory for tpu_custom_call.1']
    #allocation4 [shape = 's32[2]{0}', space=sflag, size = 0x8, scoped, tag = 'scoped memory for tpu_custom_call.1']
    #allocation5 [shape = 'u8[8192]{0}', space=vmem, size = 0x2000, scoped, tag = 'output window, operand 0']
    %10 = vsyncpa [#allocation3], 0
    %s11 = scalar_lea.sflag [#allocation3], 1
    %12 = vsyncpa %s11, 0
    %13 = vsyncpa [#allocation4], 0
    %s14 = scalar_lea.sflag [#allocation4], 1
    %15 = vsyncpa %s14, 0
    loop: start=0, step=1, limit=4
    $region2: #{tpu_custom_call.1} parent=1 // loop_pre_header
      _
    $region3: #{tpu_custom_call.1} parent=1 // loop_header
      %s17 = sphi 0, %s21
      %p18 = scmp.ge.s32.totalorder %s17, 4
      %s24 = sphi 0, %s36
      %s25 = sphi 0, %s32
      %s26 = sphi 0, %s24
      %s27 = sphi 0, %s25
      %s28 = sphi 0, %s26
      %s29 = sphi 0, %s27
      %s41 = sphi 0, %s43
      %s44 = sphi 0, %s41
      %s45 = sphi 0, %s44
      %s61 = sphi 0, %s45
      %s65 = sphi 0, %s65
      %s67 = sphi 0, %s65
      %s68 = sphi 0, %s67
      %s82 = sphi 0, %s68
      %s86 = sphi 0, %s86
      %s88 = sphi 0, %s86
      %s89 = sphi 0, %s88
      %s103 = sphi 0, %s89
      %s107 = sphi 0, %s107
      %s109 = sphi 0, %s107
      %s110 = sphi 0, %s109
      %s124 = sphi 0, %s110
      %s132 = sphi 0, %s134
      %s135 = sphi 0, %s132
      %s136 = sphi 0, %s135
      %s152 = sphi 0, %s136
      %s160 = sphi 0, %s162
      %s163 = sphi 0, %s160
      %s164 = sphi 0, %s163
      %s180 = sphi 0, %s164
    $region4: #{tpu_custom_call.1} parent=1 // loop_header_branch
      %20 = sbr.rel (%p18) target = $region8
    $region5: #{tpu_custom_call.1} parent=1 // loop_body
      %s22 = ssub.s32 %s17, 1
      %s23 = ssub.s32 %s17, 2
      %s30 = sadd.s32 1, %s25
      %p31 = scmp.ge.s32.totalorder %s30, 1
      %s32 = scalar_select %p31, 0, %s30
      %s33 = sadd.s32 1, %s24
      %s34 = scalar_select %p31, %s33, %s24
      %p35 = scmp.ge.s32.totalorder %s34, 2
      %s36 = scalar_select %p35, 0, %s34
      %s37 = ssub.s32 %s24, %s36
      %s38 = ssub.s32 %s25, %s32
      %s39 = sor.u32 %s37, %s38
      %p40 = scmp.eq.s32.totalorder %s39, 0
      %s42 = sadd.s32 %s41, 1
      %s43 = scalar_select %p40, %s41, %s42
      %p46 = pneg %p40
      %p47 = scmp.eq.s32.totalorder %s17, 1
      %p48 = por %p46, %p47
      %p49 = scmp.ne.s32.totalorder %s41, %s44
      %p50 = scmp.eq.s32.totalorder %s17, 0
      %p51 = por %p49, %p50
      %p52 = scmp.ne.s32.totalorder %s41, %s44
      %p53 = scmp.eq.s32.totalorder %s22, 1
      %p54 = por %p52, %p53
      %p55 = scmp.ne.s32.totalorder %s44, %s45
      %p56 = scmp.eq.s32.totalorder %s22, 0
      %p57 = por %p55, %p56
      %p58 = scmp.ne.s32.totalorder %s44, %s45
      %p59 = scmp.eq.s32.totalorder %s23, 1
      %p60 = por %p58, %p59
      %p62 = scmp.ne.s32.totalorder %s45, %s61
      %p63 = scmp.eq.s32.totalorder %s23, 0
      %p64 = por %p62, %p63
      %s66 = sadd.s32 %s65, 1
      %p69 = scmp.eq.s32.totalorder %s17, 1
      %p70 = scmp.ne.s32.totalorder %s65, %s67
      %p71 = scmp.eq.s32.totalorder %s17, 0
      %p72 = por %p70, %p71
      %p73 = scmp.ne.s32.totalorder %s65, %s67
      %p74 = scmp.eq.s32.totalorder %s22, 1
      %p75 = por %p73, %p74
      %p76 = scmp.ne.s32.totalorder %s67, %s68
      %p77 = scmp.eq.s32.totalorder %s22, 0
      %p78 = por %p76, %p77
      %p79 = scmp.ne.s32.totalorder %s67, %s68
      %p80 = scmp.eq.s32.totalorder %s23, 1
      %p81 = por %p79, %p80
      %p83 = scmp.ne.s32.totalorder %s68, %s82
      %p84 = scmp.eq.s32.totalorder %s23, 0
      %p85 = por %p83, %p84
      %s87 = sadd.s32 %s86, 1
      %p90 = scmp.eq.s32.totalorder %s17, 1
      %p91 = scmp.ne.s32.totalorder %s86, %s88
      %p92 = scmp.eq.s32.totalorder %s17, 0
      %p93 = por %p91, %p92
      %p94 = scmp.ne.s32.totalorder %s86, %s88
      %p95 = scmp.eq.s32.totalorder %s22, 1
      %p96 = por %p94, %p95
      %p97 = scmp.ne.s32.totalorder %s88, %s89
      %p98 = scmp.eq.s32.totalorder %s22, 0
      %p99 = por %p97, %p98
      %p100 = scmp.ne.s32.totalorder %s88, %s89
      %p101 = scmp.eq.s32.totalorder %s23, 1
      %p102 = por %p100, %p101
      %p104 = scmp.ne.s32.totalorder %s89, %s103
      %p105 = scmp.eq.s32.totalorder %s23, 0
      %p106 = por %p104, %p105
      %s108 = sadd.s32 %s107, 1
      %p111 = scmp.eq.s32.totalorder %s17, 1
      %p112 = scmp.ne.s32.totalorder %s107, %s109
      %p113 = scmp.eq.s32.totalorder %s17, 0
      %p114 = por %p112, %p113
      %p115 = scmp.ne.s32.totalorder %s107, %s109
      %p116 = scmp.eq.s32.totalorder %s22, 1
      %p117 = por %p115, %p116
      %p118 = scmp.ne.s32.totalorder %s109, %s110
      %p119 = scmp.eq.s32.totalorder %s22, 0
      %p120 = por %p118, %p119
      %p121 = scmp.ne.s32.totalorder %s109, %s110
      %p122 = scmp.eq.s32.totalorder %s23, 1
      %p123 = por %p121, %p122
      %p125 = scmp.ne.s32.totalorder %s110, %s124
      %p126 = scmp.eq.s32.totalorder %s23, 0
      %p127 = por %p125, %p126
      %s128 = ssub.s32 %s24, %s36
      %s129 = ssub.s32 %s25, %s32
      %s130 = sor.u32 %s128, %s129
      %p131 = scmp.eq.s32.totalorder %s130, 0
      %s133 = sadd.s32 %s132, 1
      %s134 = scalar_select %p131, %s132, %s133
      %p137 = pneg %p131
      %p138 = scmp.eq.s32.totalorder %s17, 1
      %p139 = por %p137, %p138
      %p140 = scmp.ne.s32.totalorder %s132, %s135
      %p141 = scmp.eq.s32.totalorder %s17, 0
      %p142 = por %p140, %p141
      %p143 = scmp.ne.s32.totalorder %s132, %s135
      %p144 = scmp.eq.s32.totalorder %s22, 1
      %p145 = por %p143, %p144
      %p146 = scmp.ne.s32.totalorder %s135, %s136
      %p147 = scmp.eq.s32.totalorder %s22, 0
      %p148 = por %p146, %p147
      %p149 = scmp.ne.s32.totalorder %s135, %s136
      %p150 = scmp.eq.s32.totalorder %s23, 1
      %p151 = por %p149, %p150
      %p153 = scmp.ne.s32.totalorder %s136, %s152
      %p154 = scmp.eq.s32.totalorder %s23, 0
      %p155 = por %p153, %p154
      %s156 = ssub.s32 %s24, %s36
      %s157 = ssub.s32 %s25, %s32
      %s158 = sor.u32 %s156, %s157
      %p159 = scmp.eq.s32.totalorder %s158, 0
      %s161 = sadd.s32 %s160, 1
      %s162 = scalar_select %p159, %s160, %s161
      %p165 = pneg %p159
      %p166 = scmp.eq.s32.totalorder %s17, 1
      %p167 = por %p165, %p166
      %p168 = scmp.ne.s32.totalorder %s160, %s163
      %p169 = scmp.eq.s32.totalorder %s17, 0
      %p170 = por %p168, %p169
      %p171 = scmp.ne.s32.totalorder %s160, %s163
      %p172 = scmp.eq.s32.totalorder %s22, 1
      %p173 = por %p171, %p172
      %p174 = scmp.ne.s32.totalorder %s163, %s164
      %p175 = scmp.eq.s32.totalorder %s22, 0
      %p176 = por %p174, %p175
      %p177 = scmp.ne.s32.totalorder %s163, %s164
      %p178 = scmp.eq.s32.totalorder %s23, 1
      %p179 = por %p177, %p178
      %p181 = scmp.ne.s32.totalorder %s164, %s180
      %p182 = scmp.eq.s32.totalorder %s23, 0
      %p183 = por %p181, %p182
      %p184 = scmp.le.s32.totalorder 1, %s17
      %p185 = scmp.lt.s32.totalorder %s17, 3
      %p186 = pnand %p184, %p185
      %p187 = pneg %p186
      // Predicated region
      $region9: #{tpu_custom_call.1} parent=5 // pred_check
        _
      $region10: #{tpu_custom_call.1} parent=5 // pred_check_branch
        %189 = sbr.rel (%p186) target = $region12
      $region11: #{tpu_custom_call.1} parent=5 // pred_region
        %s190 = ssub.s32 %s17, 1
        // Predicated region
        $region13: #{tpu_custom_call.1} parent=11 // pred_check
          %p191 = pneg %p78
        $region14: #{tpu_custom_call.1} parent=11 // pred_check_branch
          %193 = sbr.rel (%p191) target = $region16
        $region15: #{tpu_custom_call.1} parent=11 // pred_region
          _
        $region16: #{tpu_custom_call.1} parent=11 // pred_fallthru
          _
        // Predicated region
        $region17: #{tpu_custom_call.1} parent=11 // pred_check
          %p194 = pneg %p99
        $region18: #{tpu_custom_call.1} parent=11 // pred_check_branch
          %196 = sbr.rel (%p194) target = $region20
        $region19: #{tpu_custom_call.1} parent=11 // pred_region
          _
        $region20: #{tpu_custom_call.1} parent=11 // pred_fallthru
          _
        // Predicated region
        $region21: #{tpu_custom_call.1} parent=11 // pred_check
          %p197 = pneg %p120
        $region22: #{tpu_custom_call.1} parent=11 // pred_check_branch
          %199 = sbr.rel (%p197) target = $region24
        $region23: #{tpu_custom_call.1} parent=11 // pred_region
          _
        $region24: #{tpu_custom_call.1} parent=11 // pred_fallthru
          _
      $region12: #{tpu_custom_call.1} parent=5 // pred_fallthru
        _
      %p200 = scmp.lt.s32.totalorder %s17, 2
      // Predicated region
      $region25: #{tpu_custom_call.1} parent=5 // pred_check
        %p201 = pneg %p200
      $region26: #{tpu_custom_call.1} parent=5 // pred_check_branch
        %203 = sbr.rel (%p201) target = $region28
      $region27: #{tpu_custom_call.1} parent=5 // pred_region
        // Predicated region
        $region29: #{tpu_custom_call.1} parent=27 // pred_check
          %p204 = pneg %p51
        $region30: #{tpu_custom_call.1} parent=27 // pred_check_branch
          %206 = sbr.rel (%p204) target = $region32
        $region31: #{tpu_custom_call.1} parent=27 // pred_region
          %s207 = sand.u32 %s41, 1
          %s208 = scalar_lea.sflag [#allocation3], %s207
          %s209 = sand.u32 %s41, 1
          %s210 = smul.addr %s209, 64
          %s211 = scalar_lea.vmem [#allocation2], %s210
          %s213 = ssub.s32 1024, 1024
          %214 = vsyncadd %s208, %s213
          %s215 = smul.addr %s24, 16
          %s216 = sadd.s32 %s25, %s215
          %s217 = smul.addr %s216, 64
          %s218 = scalar_lea.hbm %s0, %s217
          %s219 = sshll.u32 %s211, 4
          %s220 = int_to_ptr.vmem [resolvable:$true] %s219
          %225 = dma.hbm_to_vmem [thread:$0]  %s218, 1024, %s220, %s208, 64, 64, 4
        $region32: #{tpu_custom_call.1} parent=27 // pred_fallthru
          _
        // Predicated region
        $region33: #{tpu_custom_call.1} parent=27 // pred_check
          %p226 = pneg %p142
        $region34: #{tpu_custom_call.1} parent=27 // pred_check_branch
          %228 = sbr.rel (%p226) target = $region36
        $region35: #{tpu_custom_call.1} parent=27 // pred_region
          %p229 = scmp.lt.s32.totalorder %s24, 1
          %s230 = scalar_select %p229, %s24, 1
          %p231 = scmp.lt.s32.totalorder %s25, 0
          %s232 = scalar_select %p231, %s25, 0
          %s233 = smul.addr %s230, 2
          %s234 = sadd.s32 %s232, %s233
          %s235 = smul.addr %s234, 8
          %s236 = scalar_lea.vmem %s4, %s235
        $region36: #{tpu_custom_call.1} parent=27 // pred_fallthru
          _
      $region28: #{tpu_custom_call.1} parent=5 // pred_fallthru
        _
      %p237 = scmp.le.s32.totalorder 1, %s17
      %p238 = scmp.lt.s32.totalorder %s17, 3
      %p239 = pnand %p237, %p238
      %p240 = pneg %p239
      // Predicated region
      $region37: #{tpu_custom_call.1} parent=5 // pred_check
        _
      $region38: #{tpu_custom_call.1} parent=5 // pred_check_branch
        %242 = sbr.rel (%p239) target = $region40
      $region39: #{tpu_custom_call.1} parent=5 // pred_region
        %s243 = ssub.s32 %s17, 1
        %s244 = sand.u32 %s44, 1
        %s245 = scalar_lea.sflag [#allocation3], %s244
        %s246 = sand.u32 %s44, 1
        %s247 = smul.addr %s246, 64
        %s248 = scalar_lea.vmem [#allocation2], %s247
        // Predicated region
        $region41: #{tpu_custom_call.1} parent=39 // pred_check
          %p249 = pneg %p57
        $region42: #{tpu_custom_call.1} parent=39 // pred_check_branch
          %251 = sbr.rel (%p249) target = $region44
        $region43: #{tpu_custom_call.1} parent=39 // pred_region
          %252 = dma.done %s245, 1024
        $region44: #{tpu_custom_call.1} parent=39 // pred_fallthru
          _
        %s253 = sand.u32 %s44, 1
        %s254 = scalar_lea.sflag [#allocation3], %s253
        %s255 = sand.u32 %s44, 1
        %s256 = smul.addr %s255, 64
        %s257 = scalar_lea.vmem [#allocation2], %s256
        %p258 = pneg %p57
        %p259 = pneg %p54
        %p260 = pneg %p78
        %p261 = pneg %p75
        %p262 = pneg %p99
        %p263 = pneg %p96
        %p264 = pneg %p120
        %p265 = pneg %p117
        %p266 = scmp.lt.s32.totalorder %s26, 1
        %s267 = scalar_select %p266, %s26, 1
        %p268 = scmp.lt.s32.totalorder %s27, 0
        %s269 = scalar_select %p268, %s27, 0
        %s270 = smul.addr %s267, 2
        %s271 = sadd.s32 %s269, %s270
        %s272 = smul.addr %s271, 8
        %s273 = scalar_lea.vmem %s4, %s272
        %p274 = pneg %p148
        %p275 = pneg %p145
        %p276 = pneg %p176
        %p277 = pneg %p173
        %s278 = sand.u32 %s163, 1
        %s279 = scalar_lea.sflag [#allocation4], %s278
        %s280 = sand.u32 %s163, 1
        %s281 = smul.addr %s280, 8
        %s282 = scalar_lea.vmem [#allocation5], %s281
        %p283 = scmp.lt.s32.totalorder %s26, 1
        %s284 = scalar_select %p283, %s26, 1
        %p285 = scmp.lt.s32.totalorder %s27, 0
        %s286 = scalar_select %p285, %s27, 0
        %s287 = smul.addr %s284, 2
        %s288 = sadd.s32 %s286, %s287
        %s289 = smul.addr %s288, 8
        %s290 = scalar_lea.vmem %s4, %s289
        %v292 = vld [vmem:[%s1] sm:$0xf]
        %v293 = vld [vmem:[%s1 + $0x4] sm:$0xf]
        %v294 = vld [vmem:[%s1 + $0x8] sm:$0xf]
        %v295 = vld [vmem:[%s1 + $0xc] sm:$0xf]
        %v296 = vld [vmem:[%s1 + $0x10] sm:$0xf]
        %v297 = vld [vmem:[%s1 + $0x14] sm:$0xf]
        %v298 = vld [vmem:[%s1 + $0x18] sm:$0xf]
        %v299 = vld [vmem:[%s1 + $0x1c] sm:$0xf]
        %v300 = vld [vmem:[%s248] sm:$0xf]
        %v301 = vld [vmem:[%s248 + $0x4] sm:$0xf]
        %v302 = vld [vmem:[%s248 + $0x8] sm:$0xf]
        %v303 = vld [vmem:[%s248 + $0xc] sm:$0xf]
        %v304 = vld [vmem:[%s248 + $0x10] sm:$0xf]
        %v305 = vld [vmem:[%s248 + $0x14] sm:$0xf]
        %v306 = vld [vmem:[%s248 + $0x18] sm:$0xf]
        %v307 = vld [vmem:[%s248 + $0x1c] sm:$0xf]
        %v308 = vld [vmem:[%s248 + $0x20] sm:$0xf]
        %v309 = vld [vmem:[%s248 + $0x24] sm:$0xf]
        %v310 = vld [vmem:[%s248 + $0x28] sm:$0xf]
        %v311 = vld [vmem:[%s248 + $0x2c] sm:$0xf]
        %v312 = vld [vmem:[%s248 + $0x30] sm:$0xf]
        %v313 = vld [vmem:[%s248 + $0x34] sm:$0xf]
        %v314 = vld [vmem:[%s248 + $0x38] sm:$0xf]
        %v315 = vld [vmem:[%s248 + $0x3c] sm:$0xf]
        %v316 = vld [vmem:[%s2] sm:$0xff]
        %v317 = vld [vmem:[%s2 + $0x8] sm:$0xff]
        %v318 = vld [vmem:[%s2 + $0x10] sm:$0xff]
        %v319 = vld [vmem:[%s2 + $0x18] sm:$0xff]
        %v320 = vld [vmem:[%s2 + $0x20] sm:$0xff]
        %v321 = vld [vmem:[%s2 + $0x28] sm:$0xff]
        %v322 = vld [vmem:[%s2 + $0x30] sm:$0xff]
        %v323 = vld [vmem:[%s2 + $0x38] sm:$0xff]
        %325 = vset.pattern.permute.xlu0 0
        %326 = vperm.xlu0 %325, %v316
        %v327 = vpop.permute.xlu0 %326
        %330 = vset.pattern.permute.xlu0 0
        %331 = vperm.xlu0 %330, %v317
        %v332 = vpop.permute.xlu0 %331
        %335 = vset.pattern.permute.xlu0 0
        %336 = vperm.xlu0 %335, %v318
        %v337 = vpop.permute.xlu0 %336
        %340 = vset.pattern.permute.xlu0 0
        %341 = vperm.xlu0 %340, %v319
        %v342 = vpop.permute.xlu0 %341
        %345 = vset.pattern.permute.xlu0 0
        %346 = vperm.xlu0 %345, %v320
        %v347 = vpop.permute.xlu0 %346
        %350 = vset.pattern.permute.xlu0 0
        %351 = vperm.xlu0 %350, %v321
        %v352 = vpop.permute.xlu0 %351
        %355 = vset.pattern.permute.xlu0 0
        %356 = vperm.xlu0 %355, %v322
        %v357 = vpop.permute.xlu0 %356
        %360 = vset.pattern.permute.xlu0 0
        %361 = vperm.xlu0 %360, %v323
        %v362 = vpop.permute.xlu0 %361
        %v372 = vunpack.c.l.b16 %v292
        %v373 = vunpack.c.l.b16 %v293
        %v374 = vunpack.c.l.b16 %v294
        %v375 = vunpack.c.l.b16 %v295
        %v376 = vunpack.c.l.b16 %v296
        %v377 = vunpack.c.l.b16 %v297
        %v378 = vunpack.c.l.b16 %v298
        %v379 = vunpack.c.l.b16 %v299
        %v380 = vpack.c.b16 %v373, %v372
        %v381 = vpack.c.b16 %v375, %v374
        %v382 = vpack.c.b16 %v377, %v376
        %v383 = vpack.c.b16 %v379, %v378
        %v404 = vunpack.c.l.b16 %v300
        %v405 = vunpack.c.l.b16 %v301
        %v406 = vunpack.c.l.b16 %v302
        %v407 = vunpack.c.l.b16 %v303
        %v408 = vunpack.c.l.b16 %v304
        %v409 = vunpack.c.l.b16 %v305
        %v410 = vunpack.c.l.b16 %v306
        %v411 = vunpack.c.l.b16 %v307
        %v412 = vunpack.c.l.b16 %v308
        %v413 = vunpack.c.l.b16 %v309
        %v414 = vunpack.c.l.b16 %v310
        %v415 = vunpack.c.l.b16 %v311
        %v416 = vunpack.c.l.b16 %v312
        %v417 = vunpack.c.l.b16 %v313
        %v418 = vunpack.c.l.b16 %v314
        %v419 = vunpack.c.l.b16 %v315
        %v420 = vpack.c.b16 %v405, %v404
        %v421 = vpack.c.b16 %v407, %v406
        %v422 = vpack.c.b16 %v409, %v408
        %v423 = vpack.c.b16 %v411, %v410
        %v424 = vpack.c.b16 %v413, %v412
        %v425 = vpack.c.b16 %v415, %v414
        %v426 = vpack.c.b16 %v417, %v416
        %v427 = vpack.c.b16 %v419, %v418
        %436 = vmatprep.subr.bf16.mxu0 0
        %437 = vmatpush1.bf16.msra.mxu0 %v420
        %438 = vmatprep.subr.bf16.mxu0 0
        %439 = vmatpush1.bf16.msra.mxu0 %v421
        %440 = vmatprep.subr.bf16.mxu0 0
        %441 = vmatpush1.bf16.msra.mxu0 %v422
        %442 = vmatprep.subr.bf16.mxu0 0
        %443 = vmatpush1.bf16.msra.mxu0 %v423
        %444 = vmatprep.subr.bf16.mxu0 0
        %445 = vmatpush1.bf16.msra.mxu0 %v424
        %446 = vmatprep.subr.bf16.mxu0 0
        %447 = vmatpush1.bf16.msra.mxu0 %v425
        %448 = vmatprep.subr.bf16.mxu0 0
        %449 = vmatpush1.bf16.msra.mxu0 %v426
        %450 = vmatprep.subr.bf16.mxu0 0
        %451 = vmatpush1.bf16.msra.mxu0 %v427
        %452 = vmatprep.subr.bf16.mxu0 0
        %453 = vmatpush1.bf16.msra.mxu0 0
        %454 = vmatprep.subr.bf16.mxu0 0
        %455 = vmatpush1.bf16.msra.mxu0 0
        %456 = vmatprep.subr.bf16.mxu0 0
        %457 = vmatpush1.bf16.msra.mxu0 0
        %458 = vmatprep.subr.bf16.mxu0 0
        %459 = vmatpush1.bf16.msra.mxu0 0
        %460 = vmatprep.subr.bf16.mxu0 0
        %461 = vmatpush1.bf16.msra.mxu0 0
        %462 = vmatprep.subr.bf16.mxu0 0
        %463 = vmatpush1.bf16.msra.mxu0 0
        %464 = vmatprep.subr.bf16.mxu0 0
        %465 = vmatpush1.bf16.msra.mxu0 0
        %466 = vmatprep.subr.bf16.mxu0 0
        %467 = vmatpush1.bf16.msra.mxu0 0
        %468 = vmatprep.mubr.bf16.mxu0 0
        %469 = vmatmul.mubr.bf16.gmra.mrb[0].mxu0 %v380
        %v470 = vpop.f32.mrb[0].mxu0
        %v471 = vadd.f32 %v327, %v470
        %v472 = vpop.f32.mrb[0].mxu0
        %v473 = vpop.f32.mrb[0].mxu0
        %v474 = vadd.f32 %v332, %v473
        %v475 = vpop.f32.mrb[0].mxu0
        %476 = vmatprep.mubr.bf16.mxu0 0
        %477 = vmatmul.mubr.bf16.gmra.mrb[0].mxu0 %v381
        %v478 = vpop.f32.mrb[0].mxu0
        %v479 = vadd.f32 %v337, %v478
        %v480 = vpop.f32.mrb[0].mxu0
        %v481 = vpop.f32.mrb[0].mxu0
        %v482 = vadd.f32 %v342, %v481
        %v483 = vpop.f32.mrb[0].mxu0
        %484 = vmatprep.mubr.bf16.mxu0 0
        %485 = vmatmul.mubr.bf16.gmra.mrb[0].mxu0 %v382
        %v486 = vpop.f32.mrb[0].mxu0
        %v487 = vadd.f32 %v347, %v486
        %v488 = vpop.f32.mrb[0].mxu0
        %v489 = vpop.f32.mrb[0].mxu0
        %v490 = vadd.f32 %v352, %v489
        %v491 = vpop.f32.mrb[0].mxu0
        %492 = vmatprep.mubr.bf16.mxu0 0
        %493 = vmatmul.mubr.bf16.gmra.mrb[0].mxu0 %v383
        %v494 = vpop.f32.mrb[0].mxu0
        %v495 = vadd.f32 %v357, %v494
        %v496 = vpop.f32.mrb[0].mxu0
        %v497 = vpop.f32.mrb[0].mxu0
        %v498 = vadd.f32 %v362, %v497
        %v499 = vpop.f32.mrb[0].mxu0
        %500 = vdwg.mxu0
        %v501 = vmax.f32 %v471, 0.0
        %v502 = vmax.f32 %v474, 0.0
        %v503 = vmax.f32 %v479, 0.0
        %v504 = vmax.f32 %v482, 0.0
        %v505 = vmax.f32 %v487, 0.0
        %v506 = vmax.f32 %v490, 0.0
        %v507 = vmax.f32 %v495, 0.0
        %v508 = vmax.f32 %v498, 0.0
        %v509 = vld [vmem:[%s3] sm:$0xff]
        %vm510 = vcmask 523264
        %v512 = vsel %vm510, %v509, 0
        %514 = vmatprep.subr.mxu0 0.0
        %515 = vmatpush1.msra.mxu0 %v501
        %516 = vmatprep.subr.mxu0 0.0
        %517 = vmatpush1.msra.mxu0 %v502
        %518 = vmatprep.subr.mxu0 0.0
        %519 = vmatpush1.msra.mxu0 %v503
        %520 = vmatprep.subr.mxu0 0.0
        %521 = vmatpush1.msra.mxu0 %v504
        %522 = vmatprep.subr.mxu0 0.0
        %523 = vmatpush1.msra.mxu0 %v505
        %524 = vmatprep.subr.mxu0 0.0
        %525 = vmatpush1.msra.mxu0 %v506
        %526 = vmatprep.subr.mxu0 0.0
        %527 = vmatpush1.msra.mxu0 %v507
        %528 = vmatprep.subr.mxu0 0.0
        %529 = vmatpush1.msra.mxu0 %v508
        %530 = vmatprep.subr.mxu0 0.0
        %531 = vmatpush1.msra.mxu0 0.0
        %532 = vmatprep.subr.mxu0 0.0
        %533 = vmatpush1.msra.mxu0 0.0
        %534 = vmatprep.subr.mxu0 0.0
        %535 = vmatpush1.msra.mxu0 0.0
        %536 = vmatprep.subr.mxu0 0.0
        %537 = vmatpush1.msra.mxu0 0.0
        %538 = vmatprep.subr.mxu0 0.0
        %539 = vmatpush1.msra.mxu0 0.0
        %540 = vmatprep.subr.mxu0 0.0
        %541 = vmatpush1.msra.mxu0 0.0
        %542 = vmatprep.subr.mxu0 0.0
        %543 = vmatpush1.msra.mxu0 0.0
        %544 = vmatprep.subr.mxu0 0.0
        %545 = vmatpush1.msra.mxu0 0.0
        %546 = vmatprep.subr.mxu0 0.0
        %547 = vmatpush1.msra.mxu0 0.0
        %548 = vmatprep.subr.mxu0 0.0
        %549 = vmatpush1.msra.mxu0 0.0
        %550 = vmatprep.subr.mxu0 0.0
        %551 = vmatpush1.msra.mxu0 0.0
        %552 = vmatprep.subr.mxu0 0.0
        %553 = vmatpush1.msra.mxu0 0.0
        %554 = vmatprep.subr.mxu0 0.0
        %555 = vmatpush1.msra.mxu0 0.0
        %556 = vmatprep.subr.mxu0 0.0
        %557 = vmatpush1.msra.mxu0 0.0
        %558 = vmatprep.subr.mxu0 0.0
        %559 = vmatpush1.msra.mxu0 0.0
        %560 = vmatprep.subr.mxu0 0.0
        %561 = vmatpush1.msra.mxu0 0.0
        %562 = vmatprep.subr.mxu0 0.0
        %563 = vmatpush1.msra.mxu0 0.0
        %564 = vmatprep.subr.mxu0 0.0
        %565 = vmatpush1.msra.mxu0 0.0
        %566 = vmatprep.subr.mxu0 0.0
        %567 = vmatpush1.msra.mxu0 0.0
        %568 = vmatprep.subr.mxu0 0.0
        %569 = vmatpush1.msra.mxu0 0.0
        %570 = vmatprep.subr.mxu0 0.0
        %571 = vmatpush1.msra.mxu0 0.0
        %572 = vmatprep.subr.mxu0 0.0
        %573 = vmatpush1.msra.mxu0 0.0
        %574 = vmatprep.subr.mxu0 0.0
        %575 = vmatpush1.msra.mxu0 0.0
        %576 = vmatprep.subr.mxu0 0.0
        %577 = vmatpush1.msra.mxu0 0.0
        %578 = vmatprep.mubr.f32.mxu0 0.0
        %579 = vmatmul.mubr.f32.gmra.mrb[0].mxu0 %v512
        %v580 = vpop.f32.mrb[0].mxu0
        %v581 = vadd.f32 0.0, %v580
        %v582 = vpop.f32.mrb[0].mxu0
        %583 = vdwg.mxu0
        %v584 = vmul.f32 %v581, 0.5
        %v585 = vmul.f32 %v584, 1.442695
        %v586 = vpow.pop %v585
        %v587 = vld [vmem:[%s290] sm:$0xff]
        %v588 = vld [vmem:[%s290 + $0x8] sm:$0xff]
        %v589 = vlaneseq
        %v590 = vshrl.u32 %v589, 7
        %v591 = vsub.s32 1, %v590
        %v592 = vrot.slane %v586, %v591
        %v593 = vmul.f32 %v587, %v592
        %v594 = vlaneseq
        %v595 = vshrl.u32 %v594, 7
        %v596 = vsub.s32 0, %v595
        %v597 = vrot.slane %v581, %v596
        %v598 = vadd.f32 %v597, %v593
        %v600 = vrot.slane %v586, 1
        %v602 = vmul.f32 %v588, %v600
        %v603 = vadd.f32 %v581, %v602
        %v604 = vsub.f32 0.0, %v598
        %v605 = vmul.f32 %v604, 1.442695
        %v606 = vpow.pop %v605
        %v607 = vadd.f32 %v606, 1.0
        %v608 = vrcp.pop %v607
        %v609 = vmul.f32 1.0, %v608
        %v610 = vrot.slane %v609, 4
        %v611 = vadd.f32 %v609, %v610
        %v612 = vrot.slane %v611, 2
        %v613 = vadd.f32 %v611, %v612
        %v614 = vrot.slane %v613, 1
        %v615 = vadd.f32 %v613, %v614
        %v616 = vmul.f32 %v615, 0.125
        %v617 = vsub.f32 %v609, %v616
        %v618 = vmul.f32 %v617, %v617
        %v619 = vrot.slane %v618, 4
        %v620 = vadd.f32 %v618, %v619
        %v621 = vrot.slane %v620, 2
        %v622 = vadd.f32 %v620, %v621
        %v623 = vrot.slane %v622, 1
        %v624 = vadd.f32 %v622, %v623
        %v625 = vmul.f32 %v624, 0.14285715
        %v627 = vrot.slane %v581, 2
        %v630 = vrot.slane %v603, 7
        %vm632 = vcmask 1040384
        %v633 = vsel %vm632, %v627, %v630
        %vm634 = vcmask 1041408
        %v635 = vsel %vm634, %v633, %v616
        %vm636 = vcmask 1042432
        %v637 = vsel %vm636, %v635, %v625
        %vm638 = vcmask 1043456
        %v639 = vsel %vm638, %v637, 0.0
        %640 = vst [vmem:[%s282] sm:$0xff] %v639
        %s641 = sand.u32 %s163, 1
        %s642 = scalar_lea.sflag [#allocation4], %s641
        %s643 = sand.u32 %s163, 1
        %s644 = smul.addr %s643, 8
        %s645 = scalar_lea.vmem [#allocation5], %s644
        // Predicated region
        $region45: #{tpu_custom_call.1} parent=39 // pred_check
          %p646 = pneg %p173
        $region46: #{tpu_custom_call.1} parent=39 // pred_check_branch
          %648 = sbr.rel (%p646) target = $region48
        $region47: #{tpu_custom_call.1} parent=39 // pred_region
          %s650 = ssub.s32 128, 128
          %651 = vsyncadd %s642, %s650
          %s652 = sadd.s32 %s27, %s26
          %s653 = smul.addr %s652, 128
          %s654 = scalar_lea.hbm %s5, %s653
          %s656 = sshll.u32 %s645, 4
          %s657 = int_to_ptr.vmem [resolvable:$true] %s656
          %659 = dma.vmem_to_hbm [thread:$0]  %s657, 128, %s654, %s642
        $region48: #{tpu_custom_call.1} parent=39 // pred_fallthru
          _
      $region40: #{tpu_custom_call.1} parent=5 // pred_fallthru
        _
      %p660 = scmp.le.s32.totalorder 2, %s17
      // Predicated region
      $region49: #{tpu_custom_call.1} parent=5 // pred_check
        %p661 = pneg %p660
      $region50: #{tpu_custom_call.1} parent=5 // pred_check_branch
        %663 = sbr.rel (%p661) target = $region52
      $region51: #{tpu_custom_call.1} parent=5 // pred_region
        %s664 = ssub.s32 %s17, 2
        // Predicated region
        $region53: #{tpu_custom_call.1} parent=51 // pred_check
          %p665 = pneg %p179
        $region54: #{tpu_custom_call.1} parent=51 // pred_check_branch
          %667 = sbr.rel (%p665) target = $region56
        $region55: #{tpu_custom_call.1} parent=51 // pred_region
          %s668 = sand.u32 %s164, 1
          %s669 = scalar_lea.sflag [#allocation4], %s668
          %s670 = sand.u32 %s164, 1
          %s671 = smul.addr %s670, 8
          %s672 = scalar_lea.vmem [#allocation5], %s671
          %673 = dma.done %s669, 128
        $region56: #{tpu_custom_call.1} parent=51 // pred_fallthru
          _
      $region52: #{tpu_custom_call.1} parent=5 // pred_fallthru
        _
    $region6: #{tpu_custom_call.1} parent=1 // loop_footer
      %s21 = sadd.s32 1, %s17
    $region7: #{tpu_custom_call.1} parent=1 // loop_footer_branch
      %16 = sbr.rel target = $region3
    $region8: #{tpu_custom_call.1} parent=1 // loop_exit
      _
    %674 = vsyncpa [#allocation3], 1
    %s675 = scalar_lea.sflag [#allocation3], 1
    %676 = vsyncpa %s675, 1
    %677 = vsyncpa [#allocation4], 1
    %s678 = scalar_lea.sflag [#allocation4], 1
    %679 = vsyncpa %s678, 1

</llo_original>
